<compile_context>
chip_gen: v7x
topology: tpu7x:2x2x1
jax: 0.10.0
libtpu: 0.0.40
codegen_flags: <defaults>
</compile_context>

<pallas_src>
import functools

import jax
import jax.numpy as jnp
import numpy as np
from jax.experimental import pallas as pl
from jax.experimental.pallas import tpu as pltpu


def kge_transe_kernel(hs_ref, ts_ref, rs_ref,        # struct halves  [Hd,  TB]
                      htp_ref, ttp_ref, rtp_ref,     # topology halves [Dtp, TB]
                      tp_rel_ref,                    # tp_rel^T       [Dtp, T]
                      out_ref,                       # scores         [1,  TB]
                      *, gamma, alpha):
    # Hoist the shared head_tp - tail_tp difference (used T+1 times).
    d_tp = htp_ref[...] - ttp_ref[...]                               # (Dtp, TB)

    # Topology score: min over tp_rel rows (T is small & static -> unrolled).
    n_tp = tp_rel_ref.shape[1]
    score_tp = None
    for t in range(n_tp):
        r = tp_rel_ref[:, t:t + 1]                                   # (Dtp, 1)
        s = jnp.sum(jnp.abs(d_tp + r), axis=0, keepdims=True)        # (1, TB)
        score_tp = s if score_tp is None else jnp.minimum(score_tp, s)

    # TransE score, L1-separable over the concat([struct, tp]) halves.
    l1_struct = jnp.sum(jnp.abs(hs_ref[...] + rs_ref[...] - ts_ref[...]),
                        axis=0, keepdims=True)                       # (1, TB)
    l1_tp = jnp.sum(jnp.abs(d_tp + rtp_ref[...]),
                    axis=0, keepdims=True)                           # (1, TB)
    score = gamma - (l1_struct + l1_tp)

    out_ref[...] = score - alpha * score_tp                          # (1, TB)


def kge_forward_single(sample, ent_embed_struct, ent_embed_tp, rel_emb, tp_rel,
                       gamma, alpha, *, batch_tile=256):
    """Pallas implementation of KGEModel.forward(sample, mode='single'), TransE."""
    h_idx = sample[:, 0]
    r_idx = sample[:, 1]
    t_idx = sample[:, 2]

    B = sample.shape[0]
    Hd = ent_embed_struct.shape[1]
    Dtp = ent_embed_tp.shape[1]
    T = tp_rel.shape[0]

    # Embedding lookups (index_select) - plain-JAX glue.  No concat: the
    # relation row is split into its struct / tp halves instead (L1 separable).
    hs = jnp.take(ent_embed_struct, h_idx, axis=0)    # (B, Hd)
    ts = jnp.take(ent_embed_struct, t_idx, axis=0)    # (B, Hd)
    htp = jnp.take(ent_embed_tp, h_idx, axis=0)       # (B, Dtp)
    ttp = jnp.take(ent_embed_tp, t_idx, axis=0)       # (B, Dtp)
    rel = jnp.take(rel_emb, r_idx, axis=0)            # (B, Hd + Dtp)
    rs = rel[:, :Hd]
    rtp = rel[:, Hd:]

    # Pad batch up to a multiple of the tile and go batch-on-lanes: [D, B_pad].
    n_tiles = pl.cdiv(B, batch_tile)
    Bp = n_tiles * batch_tile
    pad = Bp - B

    def prep(x):
        if pad:
            x = jnp.pad(x, ((0, pad), (0, 0)))
        return x.T                                     # (D, Bp), batch on lanes

    hs_T, ts_T, rs_T = prep(hs), prep(ts), prep(rs)
    htp_T, ttp_T, rtp_T = prep(htp), prep(ttp), prep(rtp)
    tp_rel_T = tp_rel.T                                # (Dtp, T)

    kernel = functools.partial(kge_transe_kernel,
                               gamma=float(gamma), alpha=float(alpha))

    out = pl.pallas_call(
        kernel,
        out_shape=jax.ShapeDtypeStruct((1, Bp), jnp.float32),
        grid=(n_tiles,),
        in_specs=[
            pl.BlockSpec((Hd, batch_tile), lambda i: (0, i)),    # head_struct^T
            pl.BlockSpec((Hd, batch_tile), lambda i: (0, i)),    # tail_struct^T
            pl.BlockSpec((Hd, batch_tile), lambda i: (0, i)),    # rel_struct^T
            pl.BlockSpec((Dtp, batch_tile), lambda i: (0, i)),   # head_tp^T
            pl.BlockSpec((Dtp, batch_tile), lambda i: (0, i)),   # tail_tp^T
            pl.BlockSpec((Dtp, batch_tile), lambda i: (0, i)),   # rel_tp^T
            pl.BlockSpec((Dtp, T), lambda i: (0, 0)),            # tp_rel^T (full)
        ],
        out_specs=pl.BlockSpec((1, batch_tile), lambda i: (0, i)),  # lane-dense
        compiler_params=pltpu.CompilerParams(
            dimension_semantics=("parallel",)),
    )(hs_T, ts_T, rs_T, htp_T, ttp_T, rtp_T, tp_rel_T)

    # Back to torch's (batch_size, negative_sample_size=1) shape.
    return out[0, :B].reshape(B, 1)


def reference_forward_single(sample, ent_embed_struct, ent_embed_tp, rel_emb,
                             tp_rel, gamma, alpha):
    """Pure-JAX mirror of the PyTorch forward (TransE, mode='single')."""
    h_idx, r_idx, t_idx = sample[:, 0], sample[:, 1], sample[:, 2]
    head_struct = jnp.take(ent_embed_struct, h_idx, axis=0)[:, None, :]
    head_tp = jnp.take(ent_embed_tp, h_idx, axis=0)[:, None, :]
    relation = jnp.take(rel_emb, r_idx, axis=0)[:, None, :]
    tail_struct = jnp.take(ent_embed_struct, t_idx, axis=0)[:, None, :]
    tail_tp = jnp.take(ent_embed_tp, t_idx, axis=0)[:, None, :]

    score_tps = []
    for i in range(tp_rel.shape[0]):
        tr = tp_rel[i][None, None, :]
        s = jnp.sum(jnp.abs(head_tp + tr - tail_tp), axis=2)          # (B, 1)
        score_tps.append(s[..., None])
    score_tp = jnp.min(jnp.concatenate(score_tps, axis=-1), axis=-1)  # (B, 1)

    head_emb = jnp.concatenate([head_struct, head_tp], axis=-1)
    tail_emb = jnp.concatenate([tail_struct, tail_tp], axis=-1)
    score = gamma - jnp.sum(jnp.abs(head_emb + relation - tail_emb), axis=2)
    return score - alpha * score_tp


if __name__ == "__main__":
    # ---- deterministic synthetic parameters (no checkpoint loading) ----
    nentity = 64
    nrelation = 16
    hidden_dim = 32        # struct embedding dim
    tp_dim = 32            # "pretrain" topology embedding dim
    n_tp_rel = 4           # rows of tp_rel
    gamma = 12.0
    alpha = 0.5
    epsilon = 2.0
    embedding_range = (gamma + epsilon) / hidden_dim
    relation_dim = hidden_dim + tp_dim   # TransE

    key = jax.random.PRNGKey(0)
    k1, k2, k3, k4, k5 = jax.random.split(key, 5)

    ent_embed_tp = jax.random.normal(k1, (nentity, tp_dim), dtype=jnp.float32)
    tp_rel = jax.random.normal(k2, (n_tp_rel, tp_dim), dtype=jnp.float32)
    ent_embed_struct = jax.random.uniform(
        k3, (nentity, hidden_dim), minval=-embedding_range,
        maxval=embedding_range, dtype=jnp.float32)
    rel_emb = jax.random.uniform(
        k4, (nrelation, relation_dim), minval=-embedding_range,
        maxval=embedding_range, dtype=jnp.float32)

    # sample: batch of (head, relation, tail) triples; B is deliberately not a
    # multiple of the tile to exercise the padding path (padded to 512, grid=2).
    batch = 384
    sample = jnp.stack([
        jax.random.randint(jax.random.fold_in(k5, 0), (batch,), 0, nentity),
        jax.random.randint(jax.random.fold_in(k5, 1), (batch,), 0, nrelation),
        jax.random.randint(jax.random.fold_in(k5, 2), (batch,), 0, nentity),
    ], axis=1).astype(jnp.int32)

    out = kge_forward_single(sample, ent_embed_struct, ent_embed_tp, rel_emb,
                             tp_rel, gamma, alpha, batch_tile=256)
    out = jax.block_until_ready(out)

    ref = reference_forward_single(sample, ent_embed_struct, ent_embed_tp,
                                   rel_emb, tp_rel, gamma, alpha)
    np.testing.assert_allclose(np.asarray(out), np.asarray(ref),
                               rtol=1e-5, atol=1e-4)

    print("KERNEL_OK")
</pallas_src>

<mosaic_0001>
module attributes {stable_mosaic.version = 11 : i64} {
  func.func @kge_transe_kernel(%arg0: i32, %arg1: memref<32x256xf32, #tpu.memory_space<vmem>>, %arg2: memref<32x256xf32, #tpu.memory_space<vmem>>, %arg3: memref<32x256xf32, #tpu.memory_space<vmem>>, %arg4: memref<32x256xf32, #tpu.memory_space<vmem>>, %arg5: memref<32x256xf32, #tpu.memory_space<vmem>>, %arg6: memref<32x256xf32, #tpu.memory_space<vmem>>, %arg7: memref<32x4xf32, #tpu.memory_space<vmem>>, %arg8: memref<1x256xf32, #tpu.memory_space<vmem>>) attributes {dimension_semantics = [#tpu.dimension_semantics<parallel>], iteration_bounds = array<i64: 2>, scalar_prefetch = 0 : i64, scratch_operands = 0 : i64, tpu.core_type = #tpu.core_type<tc>, window_params = [{transform_indices = @transform_0, window_bounds = array<i64: 32, 256>}, {transform_indices = @transform_1, window_bounds = array<i64: 32, 256>}, {transform_indices = @transform_2, window_bounds = array<i64: 32, 256>}, {transform_indices = @transform_3, window_bounds = array<i64: 32, 256>}, {transform_indices = @transform_4, window_bounds = array<i64: 32, 256>}, {transform_indices = @transform_5, window_bounds = array<i64: 32, 256>}, {pipeline_mode = #tpu.pipeline_mode<synchronous>, transform_indices = @transform_6, window_bounds = array<i64: 32, 4>}, {transform_indices = @transform_7, window_bounds = array<i64: 1, 256>}]} {
    %c0 = arith.constant 0 : index
    %c0_0 = arith.constant 0 : index
    %0 = vector.load %arg4[%c0, %c0_0] : memref<32x256xf32, #tpu.memory_space<vmem>>, vector<32x256xf32>
    %c0_1 = arith.constant 0 : index
    %c0_2 = arith.constant 0 : index
    %1 = vector.load %arg5[%c0_1, %c0_2] : memref<32x256xf32, #tpu.memory_space<vmem>>, vector<32x256xf32>
    %2 = arith.subf %0, %1 : vector<32x256xf32>
    %c0_3 = arith.constant 0 : index
    %c0_4 = arith.constant 0 : index
    %3 = vector.load %arg7[%c0_3, %c0_4] : memref<32x4xf32, #tpu.memory_space<vmem>>, vector<32x1xf32>
    %4 = vector.broadcast %3 : vector<32x1xf32> to vector<32x256xf32>
    %5 = arith.addf %2, %4 : vector<32x256xf32>
    %6 = math.absf %5 : vector<32x256xf32>
    %cst = arith.constant dense<0.000000e+00> : vector<256xf32>
    %7 = vector.multi_reduction <add>, %6, %cst [0] : vector<32x256xf32> to vector<256xf32>
    %8 = vector.shape_cast %7 : vector<256xf32> to vector<1x256xf32>
    %c0_5 = arith.constant 0 : index
    %c1 = arith.constant 1 : index
    %9 = vector.load %arg7[%c0_5, %c1] : memref<32x4xf32, #tpu.memory_space<vmem>>, vector<32x1xf32>
    %10 = vector.broadcast %9 : vector<32x1xf32> to vector<32x256xf32>
    %11 = arith.addf %2, %10 : vector<32x256xf32>
    %12 = math.absf %11 : vector<32x256xf32>
    %cst_6 = arith.constant dense<0.000000e+00> : vector<256xf32>
    %13 = vector.multi_reduction <add>, %12, %cst_6 [0] : vector<32x256xf32> to vector<256xf32>
    %14 = vector.shape_cast %13 : vector<256xf32> to vector<1x256xf32>
    %15 = arith.minimumf %8, %14 : vector<1x256xf32>
    %c0_7 = arith.constant 0 : index
    %c2 = arith.constant 2 : index
    %16 = vector.load %arg7[%c0_7, %c2] : memref<32x4xf32, #tpu.memory_space<vmem>>, vector<32x1xf32>
    %17 = vector.broadcast %16 : vector<32x1xf32> to vector<32x256xf32>
    %18 = arith.addf %2, %17 : vector<32x256xf32>
    %19 = math.absf %18 : vector<32x256xf32>
    %cst_8 = arith.constant dense<0.000000e+00> : vector<256xf32>
    %20 = vector.multi_reduction <add>, %19, %cst_8 [0] : vector<32x256xf32> to vector<256xf32>
    %21 = vector.shape_cast %20 : vector<256xf32> to vector<1x256xf32>
    %22 = arith.minimumf %15, %21 : vector<1x256xf32>
    %c0_9 = arith.constant 0 : index
    %c3 = arith.constant 3 : index
    %23 = vector.load %arg7[%c0_9, %c3] : memref<32x4xf32, #tpu.memory_space<vmem>>, vector<32x1xf32>
    %24 = vector.broadcast %23 : vector<32x1xf32> to vector<32x256xf32>
    %25 = arith.addf %2, %24 : vector<32x256xf32>
    %26 = math.absf %25 : vector<32x256xf32>
    %cst_10 = arith.constant dense<0.000000e+00> : vector<256xf32>
    %27 = vector.multi_reduction <add>, %26, %cst_10 [0] : vector<32x256xf32> to vector<256xf32>
    %28 = vector.shape_cast %27 : vector<256xf32> to vector<1x256xf32>
    %29 = arith.minimumf %22, %28 : vector<1x256xf32>
    %c0_11 = arith.constant 0 : index
    %c0_12 = arith.constant 0 : index
    %30 = vector.load %arg1[%c0_11, %c0_12] : memref<32x256xf32, #tpu.memory_space<vmem>>, vector<32x256xf32>
    %c0_13 = arith.constant 0 : index
    %c0_14 = arith.constant 0 : index
    %31 = vector.load %arg3[%c0_13, %c0_14] : memref<32x256xf32, #tpu.memory_space<vmem>>, vector<32x256xf32>
    %32 = arith.addf %30, %31 : vector<32x256xf32>
    %c0_15 = arith.constant 0 : index
    %c0_16 = arith.constant 0 : index
    %33 = vector.load %arg2[%c0_15, %c0_16] : memref<32x256xf32, #tpu.memory_space<vmem>>, vector<32x256xf32>
    %34 = arith.subf %32, %33 : vector<32x256xf32>
    %35 = math.absf %34 : vector<32x256xf32>
    %cst_17 = arith.constant dense<0.000000e+00> : vector<256xf32>
    %36 = vector.multi_reduction <add>, %35, %cst_17 [0] : vector<32x256xf32> to vector<256xf32>
    %37 = vector.shape_cast %36 : vector<256xf32> to vector<1x256xf32>
    %c0_18 = arith.constant 0 : index
    %c0_19 = arith.constant 0 : index
    %38 = vector.load %arg6[%c0_18, %c0_19] : memref<32x256xf32, #tpu.memory_space<vmem>>, vector<32x256xf32>
    %39 = arith.addf %2, %38 : vector<32x256xf32>
    %40 = math.absf %39 : vector<32x256xf32>
    %cst_20 = arith.constant dense<0.000000e+00> : vector<256xf32>
    %41 = vector.multi_reduction <add>, %40, %cst_20 [0] : vector<32x256xf32> to vector<256xf32>
    %42 = vector.shape_cast %41 : vector<256xf32> to vector<1x256xf32>
    %43 = arith.addf %37, %42 : vector<1x256xf32>
    %cst_21 = arith.constant 1.200000e+01 : f32
    %44 = vector.broadcast %cst_21 : f32 to vector<1x256xf32>
    %45 = arith.subf %44, %43 : vector<1x256xf32>
    %cst_22 = arith.constant 5.000000e-01 : f32
    %46 = vector.broadcast %cst_22 : f32 to vector<1x256xf32>
    %47 = arith.mulf %46, %29 : vector<1x256xf32>
    %48 = arith.subf %45, %47 : vector<1x256xf32>
    %c0_23 = arith.constant 0 : index
    %c0_24 = arith.constant 0 : index
    %49 = vector.load %arg8[%c0_23, %c0_24] : memref<1x256xf32, #tpu.memory_space<vmem>>, vector<1x256xf32>
    tpu.vector_store %arg8[%c0_23, %c0_24], %48 {strides = array<i32>} : memref<1x256xf32, #tpu.memory_space<vmem>>, vector<1x256xf32>,
    return
  }
  func.func @transform_0(%arg0: i32) -> (i32, i32) {
    %c0_i32 = arith.constant 0 : i32
    %c0_i32_0 = arith.constant 0 : i32
    return %c0_i32, %arg0 : i32, i32
  }
  func.func @transform_1(%arg0: i32) -> (i32, i32) {
    %c0_i32 = arith.constant 0 : i32
    %c0_i32_0 = arith.constant 0 : i32
    return %c0_i32, %arg0 : i32, i32
  }
  func.func @transform_2(%arg0: i32) -> (i32, i32) {
    %c0_i32 = arith.constant 0 : i32
    %c0_i32_0 = arith.constant 0 : i32
    return %c0_i32, %arg0 : i32, i32
  }
  func.func @transform_3(%arg0: i32) -> (i32, i32) {
    %c0_i32 = arith.constant 0 : i32
    %c0_i32_0 = arith.constant 0 : i32
    return %c0_i32, %arg0 : i32, i32
  }
  func.func @transform_4(%arg0: i32) -> (i32, i32) {
    %c0_i32 = arith.constant 0 : i32
    %c0_i32_0 = arith.constant 0 : i32
    return %c0_i32, %arg0 : i32, i32
  }
  func.func @transform_5(%arg0: i32) -> (i32, i32) {
    %c0_i32 = arith.constant 0 : i32
    %c0_i32_0 = arith.constant 0 : i32
    return %c0_i32, %arg0 : i32, i32
  }
  func.func @transform_6(%arg0: i32) -> (i32, i32) {
    %c0_i32 = arith.constant 0 : i32
    %c0_i32_0 = arith.constant 0 : i32
    %c0_i32_1 = arith.constant 0 : i32
    return %c0_i32, %c0_i32_0 : i32, i32
  }
  func.func @transform_7(%arg0: i32) -> (i32, i32) {
    %c0_i32 = arith.constant 0 : i32
    %c0_i32_0 = arith.constant 0 : i32
    return %c0_i32, %arg0 : i32, i32
  }
}

</mosaic_0001>

<llo_original>
// kernel: tpu_custom_call.1
$region0: #{tpu_custom_call.1}
  #allocation0 [shape = 'u32[]', space=smem, size = 0x4, offset = 0x4, fixed_abs, tag = 'smem constant byte address 0x4 - core index']
  #allocation1 [shape = 'u32[144,128]{1,0:T(1,128)}', space=vmem, size = 0x12000, scoped, tag = 'internal scratch']
  %s0 = inlined_call_operand.hbm [shape: f32[32,512], index: 0, kind: input, shape index: {}]
  %s1 = inlined_call_operand.hbm [shape: f32[32,512], index: 1, kind: input, shape index: {}]
  %s2 = inlined_call_operand.hbm [shape: f32[32,512], index: 2, kind: input, shape index: {}]
  %s3 = inlined_call_operand.hbm [shape: f32[32,512], index: 3, kind: input, shape index: {}]
  %s4 = inlined_call_operand.hbm [shape: f32[32,512], index: 4, kind: input, shape index: {}]
  %s5 = inlined_call_operand.hbm [shape: f32[32,512], index: 5, kind: input, shape index: {}]
  %s6 = inlined_call_operand.vmem [shape: f32[32,4], index: 6, kind: input, shape index: {}]
  %s7 = inlined_call_operand.hbm [shape: f32[1,512], index: 7, kind: output, shape index: {}]
  %s8 = sld [smem:[#allocation0]]
  $region85: #{tpu_custom_call.1} parent=0
    _
  %s10 = ssub.s32 1, %s8
  %s11 = scalar_select 0, %s10, %s8
  $region1: #{tpu_custom_call.1} parent=0
    #allocation2 [shape = 'u8[65536]{0}', space=vmem, size = 0x10000, scoped, tag = 'input window, operand 0']
    #allocation3 [shape = 's32[2]{0}', space=sflag, size = 0x8, scoped, tag = 'scoped memory for tpu_custom_call.1']
    #allocation4 [shape = 's32[2]{0}', space=sflag, size = 0x8, scoped, tag = 'scoped memory for tpu_custom_call.1']
    #allocation5 [shape = 'u8[65536]{0}', space=vmem, size = 0x10000, scoped, tag = 'input window, operand 1']
    #allocation6 [shape = 's32[2]{0}', space=sflag, size = 0x8, scoped, tag = 'scoped memory for tpu_custom_call.1']
    #allocation7 [shape = 'u8[65536]{0}', space=vmem, size = 0x10000, scoped, tag = 'input window, operand 2']
    #allocation8 [shape = 'u8[65536]{0}', space=vmem, size = 0x10000, scoped, tag = 'input window, operand 3']
    #allocation9 [shape = 's32[2]{0}', space=sflag, size = 0x8, scoped, tag = 'scoped memory for tpu_custom_call.1']
    #allocation10 [shape = 'u8[65536]{0}', space=vmem, size = 0x10000, scoped, tag = 'input window, operand 4']
    #allocation11 [shape = 'u8[65536]{0}', space=vmem, size = 0x10000, scoped, tag = 'input window, operand 5']
    #allocation12 [shape = 's32[2]{0}', space=sflag, size = 0x8, scoped, tag = 'scoped memory for tpu_custom_call.1']
    #allocation13 [shape = 'u8[2048]{0}', space=vmem, size = 0x800, scoped, tag = 'output window, operand 0']
    %12 = vsyncpa [#allocation3], 0
    %s13 = scalar_lea.sflag [#allocation3], 1
    %14 = vsyncpa %s13, 0
    %15 = vsyncpa [#allocation6], 0
    %s16 = scalar_lea.sflag [#allocation6], 1
    %17 = vsyncpa %s16, 0
    %18 = vsyncpa [#allocation9], 0
    %s19 = scalar_lea.sflag [#allocation9], 1
    %20 = vsyncpa %s19, 0
    %21 = vsyncpa [#allocation12], 0
    %s22 = scalar_lea.sflag [#allocation12], 1
    %23 = vsyncpa %s22, 0
    %24 = vsyncpa [#allocation4], 0
    %s25 = scalar_lea.sflag [#allocation4], 1
    %26 = vsyncpa %s25, 0
    loop: start=0, step=1, limit=4
    $region2: #{tpu_custom_call.1} parent=1 // loop_pre_header
      _
    $region3: #{tpu_custom_call.1} parent=1 // loop_header
      %s28 = sphi 0, %s32
      %p29 = scmp.ge.s32.totalorder %s28, 4
      %s38 = sphi 0, %s40
      %s41 = sphi 0, %s38
      %s42 = sphi 0, %s41
      %s58 = sphi 0, %s42
      %s64 = sphi 0, %s66
      %s67 = sphi 0, %s64
      %s68 = sphi 0, %s67
      %s84 = sphi 0, %s68
      %s90 = sphi 0, %s92
      %s93 = sphi 0, %s90
      %s94 = sphi 0, %s93
      %s110 = sphi 0, %s94
      %s116 = sphi 0, %s118
      %s119 = sphi 0, %s116
      %s120 = sphi 0, %s119
      %s136 = sphi 0, %s120
      %s142 = sphi 0, %s144
      %s145 = sphi 0, %s142
      %s146 = sphi 0, %s145
      %s162 = sphi 0, %s146
      %s168 = sphi 0, %s170
      %s171 = sphi 0, %s168
      %s172 = sphi 0, %s171
      %s188 = sphi 0, %s172
      %s192 = sphi 0, %s192
      %s194 = sphi 0, %s192
      %s195 = sphi 0, %s194
      %s209 = sphi 0, %s195
      %s215 = sphi 0, %s217
      %s218 = sphi 0, %s215
      %s219 = sphi 0, %s218
      %s235 = sphi 0, %s219
    $region4: #{tpu_custom_call.1} parent=1 // loop_header_branch
      %31 = sbr.rel (%p29) target = $region8
    $region5: #{tpu_custom_call.1} parent=1 // loop_body
      %s33 = ssub.s32 %s28, 1
      %s34 = ssub.s32 %s28, 2
      %s35 = sadd.s32 %s28, 1
      %s36 = ssub.s32 %s28, %s35
      %p37 = scmp.eq.s32.totalorder %s36, 0
      %s39 = sadd.s32 %s38, 1
      %s40 = scalar_select %p37, %s38, %s39
      %p43 = pneg %p37
      %p44 = scmp.eq.s32.totalorder %s28, 1
      %p45 = por %p43, %p44
      %p46 = scmp.ne.s32.totalorder %s38, %s41
      %p47 = scmp.eq.s32.totalorder %s28, 0
      %p48 = por %p46, %p47
      %p49 = scmp.ne.s32.totalorder %s38, %s41
      %p50 = scmp.eq.s32.totalorder %s33, 1
      %p51 = por %p49, %p50
      %p52 = scmp.ne.s32.totalorder %s41, %s42
      %p53 = scmp.eq.s32.totalorder %s33, 0
      %p54 = por %p52, %p53
      %p55 = scmp.ne.s32.totalorder %s41, %s42
      %p56 = scmp.eq.s32.totalorder %s34, 1
      %p57 = por %p55, %p56
      %p59 = scmp.ne.s32.totalorder %s42, %s58
      %p60 = scmp.eq.s32.totalorder %s34, 0
      %p61 = por %p59, %p60
      %s62 = ssub.s32 %s28, %s35
      %p63 = scmp.eq.s32.totalorder %s62, 0
      %s65 = sadd.s32 %s64, 1
      %s66 = scalar_select %p63, %s64, %s65
      %p69 = pneg %p63
      %p70 = scmp.eq.s32.totalorder %s28, 1
      %p71 = por %p69, %p70
      %p72 = scmp.ne.s32.totalorder %s64, %s67
      %p73 = scmp.eq.s32.totalorder %s28, 0
      %p74 = por %p72, %p73
      %p75 = scmp.ne.s32.totalorder %s64, %s67
      %p76 = scmp.eq.s32.totalorder %s33, 1
      %p77 = por %p75, %p76
      %p78 = scmp.ne.s32.totalorder %s67, %s68
      %p79 = scmp.eq.s32.totalorder %s33, 0
      %p80 = por %p78, %p79
      %p81 = scmp.ne.s32.totalorder %s67, %s68
      %p82 = scmp.eq.s32.totalorder %s34, 1
      %p83 = por %p81, %p82
      %p85 = scmp.ne.s32.totalorder %s68, %s84
      %p86 = scmp.eq.s32.totalorder %s34, 0
      %p87 = por %p85, %p86
      %s88 = ssub.s32 %s28, %s35
      %p89 = scmp.eq.s32.totalorder %s88, 0
      %s91 = sadd.s32 %s90, 1
      %s92 = scalar_select %p89, %s90, %s91
      %p95 = pneg %p89
      %p96 = scmp.eq.s32.totalorder %s28, 1
      %p97 = por %p95, %p96
      %p98 = scmp.ne.s32.totalorder %s90, %s93
      %p99 = scmp.eq.s32.totalorder %s28, 0
      %p100 = por %p98, %p99
      %p101 = scmp.ne.s32.totalorder %s90, %s93
      %p102 = scmp.eq.s32.totalorder %s33, 1
      %p103 = por %p101, %p102
      %p104 = scmp.ne.s32.totalorder %s93, %s94
      %p105 = scmp.eq.s32.totalorder %s33, 0
      %p106 = por %p104, %p105
      %p107 = scmp.ne.s32.totalorder %s93, %s94
      %p108 = scmp.eq.s32.totalorder %s34, 1
      %p109 = por %p107, %p108
      %p111 = scmp.ne.s32.totalorder %s94, %s110
      %p112 = scmp.eq.s32.totalorder %s34, 0
      %p113 = por %p111, %p112
      %s114 = ssub.s32 %s28, %s35
      %p115 = scmp.eq.s32.totalorder %s114, 0
      %s117 = sadd.s32 %s116, 1
      %s118 = scalar_select %p115, %s116, %s117
      %p121 = pneg %p115
      %p122 = scmp.eq.s32.totalorder %s28, 1
      %p123 = por %p121, %p122
      %p124 = scmp.ne.s32.totalorder %s116, %s119
      %p125 = scmp.eq.s32.totalorder %s28, 0
      %p126 = por %p124, %p125
      %p127 = scmp.ne.s32.totalorder %s116, %s119
      %p128 = scmp.eq.s32.totalorder %s33, 1
      %p129 = por %p127, %p128
      %p130 = scmp.ne.s32.totalorder %s119, %s120
      %p131 = scmp.eq.s32.totalorder %s33, 0
      %p132 = por %p130, %p131
      %p133 = scmp.ne.s32.totalorder %s119, %s120
      %p134 = scmp.eq.s32.totalorder %s34, 1
      %p135 = por %p133, %p134
      %p137 = scmp.ne.s32.totalorder %s120, %s136
      %p138 = scmp.eq.s32.totalorder %s34, 0
      %p139 = por %p137, %p138
      %s140 = ssub.s32 %s28, %s35
      %p141 = scmp.eq.s32.totalorder %s140, 0
      %s143 = sadd.s32 %s142, 1
      %s144 = scalar_select %p141, %s142, %s143
      %p147 = pneg %p141
      %p148 = scmp.eq.s32.totalorder %s28, 1
      %p149 = por %p147, %p148
      %p150 = scmp.ne.s32.totalorder %s142, %s145
      %p151 = scmp.eq.s32.totalorder %s28, 0
      %p152 = por %p150, %p151
      %p153 = scmp.ne.s32.totalorder %s142, %s145
      %p154 = scmp.eq.s32.totalorder %s33, 1
      %p155 = por %p153, %p154
      %p156 = scmp.ne.s32.totalorder %s145, %s146
      %p157 = scmp.eq.s32.totalorder %s33, 0
      %p158 = por %p156, %p157
      %p159 = scmp.ne.s32.totalorder %s145, %s146
      %p160 = scmp.eq.s32.totalorder %s34, 1
      %p161 = por %p159, %p160
      %p163 = scmp.ne.s32.totalorder %s146, %s162
      %p164 = scmp.eq.s32.totalorder %s34, 0
      %p165 = por %p163, %p164
      %s166 = ssub.s32 %s28, %s35
      %p167 = scmp.eq.s32.totalorder %s166, 0
      %s169 = sadd.s32 %s168, 1
      %s170 = scalar_select %p167, %s168, %s169
      %p173 = pneg %p167
      %p174 = scmp.eq.s32.totalorder %s28, 1
      %p175 = por %p173, %p174
      %p176 = scmp.ne.s32.totalorder %s168, %s171
      %p177 = scmp.eq.s32.totalorder %s28, 0
      %p178 = por %p176, %p177
      %p179 = scmp.ne.s32.totalorder %s168, %s171
      %p180 = scmp.eq.s32.totalorder %s33, 1
      %p181 = por %p179, %p180
      %p182 = scmp.ne.s32.totalorder %s171, %s172
      %p183 = scmp.eq.s32.totalorder %s33, 0
      %p184 = por %p182, %p183
      %p185 = scmp.ne.s32.totalorder %s171, %s172
      %p186 = scmp.eq.s32.totalorder %s34, 1
      %p187 = por %p185, %p186
      %p189 = scmp.ne.s32.totalorder %s172, %s188
      %p190 = scmp.eq.s32.totalorder %s34, 0
      %p191 = por %p189, %p190
      %s193 = sadd.s32 %s192, 1
      %p196 = scmp.eq.s32.totalorder %s28, 1
      %p197 = scmp.ne.s32.totalorder %s192, %s194
      %p198 = scmp.eq.s32.totalorder %s28, 0
      %p199 = por %p197, %p198
      %p200 = scmp.ne.s32.totalorder %s192, %s194
      %p201 = scmp.eq.s32.totalorder %s33, 1
      %p202 = por %p200, %p201
      %p203 = scmp.ne.s32.totalorder %s194, %s195
      %p204 = scmp.eq.s32.totalorder %s33, 0
      %p205 = por %p203, %p204
      %p206 = scmp.ne.s32.totalorder %s194, %s195
      %p207 = scmp.eq.s32.totalorder %s34, 1
      %p208 = por %p206, %p207
      %p210 = scmp.ne.s32.totalorder %s195, %s209
      %p211 = scmp.eq.s32.totalorder %s34, 0
      %p212 = por %p210, %p211
      %s213 = ssub.s32 %s28, %s35
      %p214 = scmp.eq.s32.totalorder %s213, 0
      %s216 = sadd.s32 %s215, 1
      %s217 = scalar_select %p214, %s215, %s216
      %p220 = pneg %p214
      %p221 = scmp.eq.s32.totalorder %s28, 1
      %p222 = por %p220, %p221
      %p223 = scmp.ne.s32.totalorder %s215, %s218
      %p224 = scmp.eq.s32.totalorder %s28, 0
      %p225 = por %p223, %p224
      %p226 = scmp.ne.s32.totalorder %s215, %s218
      %p227 = scmp.eq.s32.totalorder %s33, 1
      %p228 = por %p226, %p227
      %p229 = scmp.ne.s32.totalorder %s218, %s219
      %p230 = scmp.eq.s32.totalorder %s33, 0
      %p231 = por %p229, %p230
      %p232 = scmp.ne.s32.totalorder %s218, %s219
      %p233 = scmp.eq.s32.totalorder %s34, 1
      %p234 = por %p232, %p233
      %p236 = scmp.ne.s32.totalorder %s219, %s235
      %p237 = scmp.eq.s32.totalorder %s34, 0
      %p238 = por %p236, %p237
      %p239 = scmp.le.s32.totalorder 1, %s28
      %p240 = scmp.lt.s32.totalorder %s28, 3
      %p241 = pnand %p239, %p240
      %p242 = pneg %p241
      // Predicated region
      $region9: #{tpu_custom_call.1} parent=5 // pred_check
        _
      $region10: #{tpu_custom_call.1} parent=5 // pred_check_branch
        %244 = sbr.rel (%p241) target = $region12
      $region11: #{tpu_custom_call.1} parent=5 // pred_region
        %s245 = ssub.s32 %s28, 1
        // Predicated region
        $region13: #{tpu_custom_call.1} parent=11 // pred_check
          %p246 = pneg %p205
        $region14: #{tpu_custom_call.1} parent=11 // pred_check_branch
          %248 = sbr.rel (%p246) target = $region16
        $region15: #{tpu_custom_call.1} parent=11 // pred_region
          _
        $region16: #{tpu_custom_call.1} parent=11 // pred_fallthru
          _
      $region12: #{tpu_custom_call.1} parent=5 // pred_fallthru
        _
      %p249 = scmp.lt.s32.totalorder %s28, 2
      // Predicated region
      $region17: #{tpu_custom_call.1} parent=5 // pred_check
        %p250 = pneg %p249
      $region18: #{tpu_custom_call.1} parent=5 // pred_check_branch
        %252 = sbr.rel (%p250) target = $region20
      $region19: #{tpu_custom_call.1} parent=5 // pred_region
        // Predicated region
        $region21: #{tpu_custom_call.1} parent=19 // pred_check
          %p253 = pneg %p48
        $region22: #{tpu_custom_call.1} parent=19 // pred_check_branch
          %255 = sbr.rel (%p253) target = $region24
        $region23: #{tpu_custom_call.1} parent=19 // pred_region
          %s256 = sand.u32 %s38, 1
          %s257 = scalar_lea.sflag [#allocation3], %s256
          %s258 = sand.u32 %s38, 1
          %s259 = smul.addr %s258, 64
          %s260 = scalar_lea.vmem [#allocation2], %s259
          %s261 = smul.u32 2, %s28
          %s263 = ssub.s32 1024, 1024
          %264 = vsyncadd %s257, %s263
          %s265 = smul.addr %s261, 128
          %s266 = scalar_lea.hbm %s0, %s265
          %s267 = sshll.u32 %s260, 4
          %s268 = int_to_ptr.vmem [resolvable:$true] %s267
          %273 = dma.hbm_to_vmem [thread:$0]  %s266, 1024, %s268, %s257, 512, 256, 16
        $region24: #{tpu_custom_call.1} parent=19 // pred_fallthru
          _
        // Predicated region
        $region25: #{tpu_custom_call.1} parent=19 // pred_check
          %p274 = pneg %p74
        $region26: #{tpu_custom_call.1} parent=19 // pred_check_branch
          %276 = sbr.rel (%p274) target = $region28
        $region27: #{tpu_custom_call.1} parent=19 // pred_region
          %s277 = sand.u32 %s28, 1
          %s278 = scalar_lea.sflag [#allocation6], %s277
          %s279 = sand.u32 %s64, 1
          %s280 = smul.addr %s279, 64
          %s281 = scalar_lea.vmem [#allocation5], %s280
          %s282 = smul.u32 2, %s28
          %s284 = ssub.s32 1024, 1024
          %285 = vsyncadd %s278, %s284
          %s286 = smul.addr %s282, 128
          %s287 = scalar_lea.hbm %s1, %s286
          %s288 = sshll.u32 %s281, 4
          %s289 = int_to_ptr.vmem [resolvable:$true] %s288
          %294 = dma.hbm_to_vmem [thread:$0]  %s287, 1024, %s289, %s278, 512, 256, 16
        $region28: #{tpu_custom_call.1} parent=19 // pred_fallthru
          _
        // Predicated region
        $region29: #{tpu_custom_call.1} parent=19 // pred_check
          %p295 = pneg %p100
        $region30: #{tpu_custom_call.1} parent=19 // pred_check_branch
          %297 = sbr.rel (%p295) target = $region32
        $region31: #{tpu_custom_call.1} parent=19 // pred_region
          %s298 = sand.u32 %s28, 1
          %s299 = scalar_lea.sflag [#allocation6], %s298
          %s300 = sand.u32 %s90, 1
          %s301 = smul.addr %s300, 64
          %s302 = scalar_lea.vmem [#allocation7], %s301
          %s303 = smul.u32 2, %s28
          %s305 = ssub.s32 1024, 1024
          %306 = vsyncadd %s299, %s305
          %s307 = smul.addr %s303, 128
          %s308 = scalar_lea.hbm %s2, %s307
          %s309 = sshll.u32 %s302, 4
          %s310 = int_to_ptr.vmem [resolvable:$true] %s309
          %315 = dma.hbm_to_vmem [thread:$0]  %s308, 1024, %s310, %s299, 512, 256, 16
        $region32: #{tpu_custom_call.1} parent=19 // pred_fallthru
          _
        // Predicated region
        $region33: #{tpu_custom_call.1} parent=19 // pred_check
          %p316 = pneg %p126
        $region34: #{tpu_custom_call.1} parent=19 // pred_check_branch
          %318 = sbr.rel (%p316) target = $region36
        $region35: #{tpu_custom_call.1} parent=19 // pred_region
          %s319 = sand.u32 %s28, 1
          %s320 = scalar_lea.sflag [#allocation9], %s319
          %s321 = sand.u32 %s116, 1
          %s322 = smul.addr %s321, 64
          %s323 = scalar_lea.vmem [#allocation8], %s322
          %s324 = smul.u32 2, %s28
          %s326 = ssub.s32 1024, 1024
          %327 = vsyncadd %s320, %s326
          %s328 = smul.addr %s324, 128
          %s329 = scalar_lea.hbm %s3, %s328
          %s330 = sshll.u32 %s323, 4
          %s331 = int_to_ptr.vmem [resolvable:$true] %s330
          %336 = dma.hbm_to_vmem [thread:$0]  %s329, 1024, %s331, %s320, 512, 256, 16
        $region36: #{tpu_custom_call.1} parent=19 // pred_fallthru
          _
        // Predicated region
        $region37: #{tpu_custom_call.1} parent=19 // pred_check
          %p337 = pneg %p152
        $region38: #{tpu_custom_call.1} parent=19 // pred_check_branch
          %339 = sbr.rel (%p337) target = $region40
        $region39: #{tpu_custom_call.1} parent=19 // pred_region
          %s340 = sand.u32 %s28, 1
          %s341 = scalar_lea.sflag [#allocation9], %s340
          %s342 = sand.u32 %s142, 1
          %s343 = smul.addr %s342, 64
          %s344 = scalar_lea.vmem [#allocation10], %s343
          %s345 = smul.u32 2, %s28
          %s347 = ssub.s32 1024, 1024
          %348 = vsyncadd %s341, %s347
          %s349 = smul.addr %s345, 128
          %s350 = scalar_lea.hbm %s4, %s349
          %s351 = sshll.u32 %s344, 4
          %s352 = int_to_ptr.vmem [resolvable:$true] %s351
          %357 = dma.hbm_to_vmem [thread:$0]  %s350, 1024, %s352, %s341, 512, 256, 16
        $region40: #{tpu_custom_call.1} parent=19 // pred_fallthru
          _
        // Predicated region
        $region41: #{tpu_custom_call.1} parent=19 // pred_check
          %p358 = pneg %p178
        $region42: #{tpu_custom_call.1} parent=19 // pred_check_branch
          %360 = sbr.rel (%p358) target = $region44
        $region43: #{tpu_custom_call.1} parent=19 // pred_region
          %s361 = sand.u32 %s168, 1
          %s362 = scalar_lea.sflag [#allocation12], %s361
          %s363 = sand.u32 %s168, 1
          %s364 = smul.addr %s363, 64
          %s365 = scalar_lea.vmem [#allocation11], %s364
          %s366 = smul.u32 2, %s28
          %s368 = ssub.s32 1024, 1024
          %369 = vsyncadd %s362, %s368
          %s370 = smul.addr %s366, 128
          %s371 = scalar_lea.hbm %s5, %s370
          %s372 = sshll.u32 %s365, 4
          %s373 = int_to_ptr.vmem [resolvable:$true] %s372
          %378 = dma.hbm_to_vmem [thread:$0]  %s371, 1024, %s373, %s362, 512, 256, 16
        $region44: #{tpu_custom_call.1} parent=19 // pred_fallthru
          _
      $region20: #{tpu_custom_call.1} parent=5 // pred_fallthru
        _
      %p379 = scmp.le.s32.totalorder 1, %s28
      %p380 = scmp.lt.s32.totalorder %s28, 3
      %p381 = pnand %p379, %p380
      %p382 = pneg %p381
      // Predicated region
      $region45: #{tpu_custom_call.1} parent=5 // pred_check
        _
      $region46: #{tpu_custom_call.1} parent=5 // pred_check_branch
        %384 = sbr.rel (%p381) target = $region48
      $region47: #{tpu_custom_call.1} parent=5 // pred_region
        %s385 = ssub.s32 %s28, 1
        %s386 = sand.u32 %s41, 1
        %s387 = scalar_lea.sflag [#allocation3], %s386
        %s388 = sand.u32 %s41, 1
        %s389 = smul.addr %s388, 64
        %s390 = scalar_lea.vmem [#allocation2], %s389
        // Predicated region
        $region49: #{tpu_custom_call.1} parent=47 // pred_check
          %p391 = pneg %p54
        $region50: #{tpu_custom_call.1} parent=47 // pred_check_branch
          %393 = sbr.rel (%p391) target = $region52
        $region51: #{tpu_custom_call.1} parent=47 // pred_region
          %394 = dma.done %s387, 1024
        $region52: #{tpu_custom_call.1} parent=47 // pred_fallthru
          _
        %s395 = sand.u32 %s33, 1
        %s396 = scalar_lea.sflag [#allocation6], %s395
        %s397 = sand.u32 %s67, 1
        %s398 = smul.addr %s397, 64
        %s399 = scalar_lea.vmem [#allocation5], %s398
        // Predicated region
        $region53: #{tpu_custom_call.1} parent=47 // pred_check
          %p400 = pneg %p80
        $region54: #{tpu_custom_call.1} parent=47 // pred_check_branch
          %402 = sbr.rel (%p400) target = $region56
        $region55: #{tpu_custom_call.1} parent=47 // pred_region
          %403 = dma.done %s396, 1024
        $region56: #{tpu_custom_call.1} parent=47 // pred_fallthru
          _
        %s404 = sand.u32 %s33, 1
        %s405 = scalar_lea.sflag [#allocation6], %s404
        %s406 = sand.u32 %s93, 1
        %s407 = smul.addr %s406, 64
        %s408 = scalar_lea.vmem [#allocation7], %s407
        // Predicated region
        $region57: #{tpu_custom_call.1} parent=47 // pred_check
          %p409 = pneg %p106
        $region58: #{tpu_custom_call.1} parent=47 // pred_check_branch
          %411 = sbr.rel (%p409) target = $region60
        $region59: #{tpu_custom_call.1} parent=47 // pred_region
          %412 = dma.done %s405, 1024
        $region60: #{tpu_custom_call.1} parent=47 // pred_fallthru
          _
        %s413 = sand.u32 %s33, 1
        %s414 = scalar_lea.sflag [#allocation9], %s413
        %s415 = sand.u32 %s119, 1
        %s416 = smul.addr %s415, 64
        %s417 = scalar_lea.vmem [#allocation8], %s416
        // Predicated region
        $region61: #{tpu_custom_call.1} parent=47 // pred_check
          %p418 = pneg %p132
        $region62: #{tpu_custom_call.1} parent=47 // pred_check_branch
          %420 = sbr.rel (%p418) target = $region64
        $region63: #{tpu_custom_call.1} parent=47 // pred_region
          %421 = dma.done %s414, 1024
        $region64: #{tpu_custom_call.1} parent=47 // pred_fallthru
          _
        %s422 = sand.u32 %s33, 1
        %s423 = scalar_lea.sflag [#allocation9], %s422
        %s424 = sand.u32 %s145, 1
        %s425 = smul.addr %s424, 64
        %s426 = scalar_lea.vmem [#allocation10], %s425
        // Predicated region
        $region65: #{tpu_custom_call.1} parent=47 // pred_check
          %p427 = pneg %p158
        $region66: #{tpu_custom_call.1} parent=47 // pred_check_branch
          %429 = sbr.rel (%p427) target = $region68
        $region67: #{tpu_custom_call.1} parent=47 // pred_region
          %430 = dma.done %s423, 1024
        $region68: #{tpu_custom_call.1} parent=47 // pred_fallthru
          _
        %s431 = sand.u32 %s171, 1
        %s432 = scalar_lea.sflag [#allocation12], %s431
        %s433 = sand.u32 %s171, 1
        %s434 = smul.addr %s433, 64
        %s435 = scalar_lea.vmem [#allocation11], %s434
        // Predicated region
        $region69: #{tpu_custom_call.1} parent=47 // pred_check
          %p436 = pneg %p184
        $region70: #{tpu_custom_call.1} parent=47 // pred_check_branch
          %438 = sbr.rel (%p436) target = $region72
        $region71: #{tpu_custom_call.1} parent=47 // pred_region
          %439 = dma.done %s432, 1024
        $region72: #{tpu_custom_call.1} parent=47 // pred_fallthru
          _
        %s440 = sand.u32 %s41, 1
        %s441 = scalar_lea.sflag [#allocation3], %s440
        %s442 = sand.u32 %s41, 1
        %s443 = smul.addr %s442, 64
        %s444 = scalar_lea.vmem [#allocation2], %s443
        %p445 = pneg %p54
        %p446 = pneg %p51
        %s447 = sand.u32 %s33, 1
        %s448 = scalar_lea.sflag [#allocation6], %s447
        %s449 = sand.u32 %s67, 1
        %s450 = smul.addr %s449, 64
        %s451 = scalar_lea.vmem [#allocation5], %s450
        %p452 = pneg %p80
        %p453 = pneg %p77
        %s454 = sand.u32 %s33, 1
        %s455 = scalar_lea.sflag [#allocation6], %s454
        %s456 = sand.u32 %s93, 1
        %s457 = smul.addr %s456, 64
        %s458 = scalar_lea.vmem [#allocation7], %s457
        %p459 = pneg %p106
        %p460 = pneg %p103
        %s461 = sand.u32 %s33, 1
        %s462 = scalar_lea.sflag [#allocation9], %s461
        %s463 = sand.u32 %s119, 1
        %s464 = smul.addr %s463, 64
        %s465 = scalar_lea.vmem [#allocation8], %s464
        %p466 = pneg %p132
        %p467 = pneg %p129
        %s468 = sand.u32 %s33, 1
        %s469 = scalar_lea.sflag [#allocation9], %s468
        %s470 = sand.u32 %s145, 1
        %s471 = smul.addr %s470, 64
        %s472 = scalar_lea.vmem [#allocation10], %s471
        %p473 = pneg %p158
        %p474 = pneg %p155
        %s475 = sand.u32 %s171, 1
        %s476 = scalar_lea.sflag [#allocation12], %s475
        %s477 = sand.u32 %s171, 1
        %s478 = smul.addr %s477, 64
        %s479 = scalar_lea.vmem [#allocation11], %s478
        %p480 = pneg %p184
        %p481 = pneg %p181
        %p482 = pneg %p205
        %p483 = pneg %p202
        %p484 = pneg %p231
        %p485 = pneg %p228
        %s486 = sand.u32 %s218, 1
        %s487 = scalar_lea.sflag [#allocation4], %s486
        %s488 = sand.u32 %s218, 1
        %s489 = smul.addr %s488, 2
        %s490 = scalar_lea.vmem [#allocation13], %s489
        %s491 = smul.u32 2, %s33
        %s492 = smul.u32 2, %s33
        %s493 = smul.u32 2, %s33
        %s494 = smul.u32 2, %s33
        %s495 = smul.u32 2, %s33
        %s496 = smul.u32 2, %s33
        %s497 = smul.u32 2, %s33
        %v498 = vld [vmem:[%s417] sm:$0xff]
        %v499 = vld [vmem:[%s417 + $0x8] sm:$0xff]
        %v500 = vld [vmem:[%s417 + $0x10] sm:$0xff]
        %v501 = vld [vmem:[%s417 + $0x18] sm:$0xff]
        %v502 = vld [vmem:[%s417 + $0x20] sm:$0xff]
        %v503 = vld [vmem:[%s417 + $0x28] sm:$0xff]
        %v504 = vld [vmem:[%s417 + $0x30] sm:$0xff]
        %v505 = vld [vmem:[%s417 + $0x38] sm:$0xff]
        %v506 = vld [vmem:[%s426] sm:$0xff]
        %v507 = vld [vmem:[%s426 + $0x8] sm:$0xff]
        %v508 = vld [vmem:[%s426 + $0x10] sm:$0xff]
        %v509 = vld [vmem:[%s426 + $0x18] sm:$0xff]
        %v510 = vld [vmem:[%s426 + $0x20] sm:$0xff]
        %v511 = vld [vmem:[%s426 + $0x28] sm:$0xff]
        %v512 = vld [vmem:[%s426 + $0x30] sm:$0xff]
        %v513 = vld [vmem:[%s426 + $0x38] sm:$0xff]
        %v514 = vsub.f32 %v498, %v506
        %v515 = vsub.f32 %v499, %v507
        %v516 = vsub.f32 %v500, %v508
        %v517 = vsub.f32 %v501, %v509
        %v518 = vsub.f32 %v502, %v510
        %v519 = vsub.f32 %v503, %v511
        %v520 = vsub.f32 %v504, %v512
        %v521 = vsub.f32 %v505, %v513
        %v522 = vld [vmem:[%s6] sm:$0xff]
        %v523 = vld [vmem:[%s6 + $0x8] sm:$0xff]
        %v524 = vld [vmem:[%s6 + $0x10] sm:$0xff]
        %v525 = vld [vmem:[%s6 + $0x18] sm:$0xff]
        %527 = vset.pattern.permute.xlu0 0
        %528 = vperm.xlu0 %527, %v522
        %v529 = vpop.permute.xlu0 %528
        %532 = vset.pattern.permute.xlu0 0
        %533 = vperm.xlu0 %532, %v523
        %v534 = vpop.permute.xlu0 %533
        %537 = vset.pattern.permute.xlu0 0
        %538 = vperm.xlu0 %537, %v524
        %v539 = vpop.permute.xlu0 %538
        %542 = vset.pattern.permute.xlu0 0
        %543 = vperm.xlu0 %542, %v525
        %v544 = vpop.permute.xlu0 %543
        %v546 = vadd.f32 %v514, %v529
        %v547 = vadd.f32 %v515, %v529
        %v548 = vadd.f32 %v516, %v534
        %v549 = vadd.f32 %v517, %v534
        %v550 = vadd.f32 %v518, %v539
        %v551 = vadd.f32 %v519, %v539
        %v552 = vadd.f32 %v520, %v544
        %v553 = vadd.f32 %v521, %v544
        %v554 = vand.u32 2147483647, %v546
        %v555 = vand.u32 2147483647, %v547
        %v556 = vand.u32 2147483647, %v548
        %v557 = vand.u32 2147483647, %v549
        %v558 = vand.u32 2147483647, %v550
        %v559 = vand.u32 2147483647, %v551
        %v560 = vand.u32 2147483647, %v552
        %v561 = vand.u32 2147483647, %v553
        %v562 = vadd.f32 %v554, %v556
        %v563 = vadd.f32 %v562, %v558
        %v564 = vadd.f32 %v563, %v560
        %v565 = vrot.slane %v564, 4
        %v566 = vadd.f32 %v564, %v565
        %v567 = vrot.slane %v566, 2
        %v568 = vadd.f32 %v566, %v567
        %v569 = vrot.slane %v568, 1
        %v570 = vadd.f32 %v568, %v569
        %v571 = vadd.f32 %v555, %v557
        %v572 = vadd.f32 %v571, %v559
        %v573 = vadd.f32 %v572, %v561
        %v574 = vrot.slane %v573, 4
        %v575 = vadd.f32 %v573, %v574
        %v576 = vrot.slane %v575, 2
        %v577 = vadd.f32 %v575, %v576
        %v578 = vrot.slane %v577, 1
        %v579 = vadd.f32 %v577, %v578
        %580 = vset.pattern.permute.xlu0 1
        %581 = vperm.xlu0 %580, %v522
        %v582 = vpop.permute.xlu0 %581
        %584 = vset.pattern.permute.xlu0 1
        %585 = vperm.xlu0 %584, %v523
        %v586 = vpop.permute.xlu0 %585
        %588 = vset.pattern.permute.xlu0 1
        %589 = vperm.xlu0 %588, %v524
        %v590 = vpop.permute.xlu0 %589
        %592 = vset.pattern.permute.xlu0 1
        %593 = vperm.xlu0 %592, %v525
        %v594 = vpop.permute.xlu0 %593
        %v596 = vadd.f32 %v514, %v582
        %v597 = vadd.f32 %v515, %v582
        %v598 = vadd.f32 %v516, %v586
        %v599 = vadd.f32 %v517, %v586
        %v600 = vadd.f32 %v518, %v590
        %v601 = vadd.f32 %v519, %v590
        %v602 = vadd.f32 %v520, %v594
        %v603 = vadd.f32 %v521, %v594
        %v604 = vand.u32 2147483647, %v596
        %v605 = vand.u32 2147483647, %v597
        %v606 = vand.u32 2147483647, %v598
        %v607 = vand.u32 2147483647, %v599
        %v608 = vand.u32 2147483647, %v600
        %v609 = vand.u32 2147483647, %v601
        %v610 = vand.u32 2147483647, %v602
        %v611 = vand.u32 2147483647, %v603
        %v612 = vadd.f32 %v604, %v606
        %v613 = vadd.f32 %v612, %v608
        %v614 = vadd.f32 %v613, %v610
        %v615 = vrot.slane %v614, 4
        %v616 = vadd.f32 %v614, %v615
        %v617 = vrot.slane %v616, 2
        %v618 = vadd.f32 %v616, %v617
        %v619 = vrot.slane %v618, 1
        %v620 = vadd.f32 %v618, %v619
        %v621 = vadd.f32 %v605, %v607
        %v622 = vadd.f32 %v621, %v609
        %v623 = vadd.f32 %v622, %v611
        %v624 = vrot.slane %v623, 4
        %v625 = vadd.f32 %v623, %v624
        %v626 = vrot.slane %v625, 2
        %v627 = vadd.f32 %v625, %v626
        %v628 = vrot.slane %v627, 1
        %v629 = vadd.f32 %v627, %v628
        %v630 = vmin.f32 %v570, %v620
        %v631 = vmin.f32 %v579, %v629
        %632 = vset.pattern.permute.xlu0 2
        %633 = vperm.xlu0 %632, %v522
        %v634 = vpop.permute.xlu0 %633
        %636 = vset.pattern.permute.xlu0 2
        %637 = vperm.xlu0 %636, %v523
        %v638 = vpop.permute.xlu0 %637
        %640 = vset.pattern.permute.xlu0 2
        %641 = vperm.xlu0 %640, %v524
        %v642 = vpop.permute.xlu0 %641
        %644 = vset.pattern.permute.xlu0 2
        %645 = vperm.xlu0 %644, %v525
        %v646 = vpop.permute.xlu0 %645
        %v648 = vadd.f32 %v514, %v634
        %v649 = vadd.f32 %v515, %v634
        %v650 = vadd.f32 %v516, %v638
        %v651 = vadd.f32 %v517, %v638
        %v652 = vadd.f32 %v518, %v642
        %v653 = vadd.f32 %v519, %v642
        %v654 = vadd.f32 %v520, %v646
        %v655 = vadd.f32 %v521, %v646
        %v656 = vand.u32 2147483647, %v648
        %v657 = vand.u32 2147483647, %v649
        %v658 = vand.u32 2147483647, %v650
        %v659 = vand.u32 2147483647, %v651
        %v660 = vand.u32 2147483647, %v652
        %v661 = vand.u32 2147483647, %v653
        %v662 = vand.u32 2147483647, %v654
        %v663 = vand.u32 2147483647, %v655
        %v664 = vadd.f32 %v656, %v658
        %v665 = vadd.f32 %v664, %v660
        %v666 = vadd.f32 %v665, %v662
        %v667 = vrot.slane %v666, 4
        %v668 = vadd.f32 %v666, %v667
        %v669 = vrot.slane %v668, 2
        %v670 = vadd.f32 %v668, %v669
        %v671 = vrot.slane %v670, 1
        %v672 = vadd.f32 %v670, %v671
        %v673 = vadd.f32 %v657, %v659
        %v674 = vadd.f32 %v673, %v661
        %v675 = vadd.f32 %v674, %v663
        %v676 = vrot.slane %v675, 4
        %v677 = vadd.f32 %v675, %v676
        %v678 = vrot.slane %v677, 2
        %v679 = vadd.f32 %v677, %v678
        %v680 = vrot.slane %v679, 1
        %v681 = vadd.f32 %v679, %v680
        %v682 = vmin.f32 %v630, %v672
        %v683 = vmin.f32 %v631, %v681
        %684 = vset.pattern.permute.xlu0 3
        %685 = vperm.xlu0 %684, %v522
        %v686 = vpop.permute.xlu0 %685
        %688 = vset.pattern.permute.xlu0 3
        %689 = vperm.xlu0 %688, %v523
        %v690 = vpop.permute.xlu0 %689
        %692 = vset.pattern.permute.xlu0 3
        %693 = vperm.xlu0 %692, %v524
        %v694 = vpop.permute.xlu0 %693
        %696 = vset.pattern.permute.xlu0 3
        %697 = vperm.xlu0 %696, %v525
        %v698 = vpop.permute.xlu0 %697
        %v700 = vadd.f32 %v514, %v686
        %v701 = vadd.f32 %v515, %v686
        %v702 = vadd.f32 %v516, %v690
        %v703 = vadd.f32 %v517, %v690
        %v704 = vadd.f32 %v518, %v694
        %v705 = vadd.f32 %v519, %v694
        %v706 = vadd.f32 %v520, %v698
        %v707 = vadd.f32 %v521, %v698
        %v708 = vand.u32 2147483647, %v700
        %v709 = vand.u32 2147483647, %v701
        %v710 = vand.u32 2147483647, %v702
        %v711 = vand.u32 2147483647, %v703
        %v712 = vand.u32 2147483647, %v704
        %v713 = vand.u32 2147483647, %v705
        %v714 = vand.u32 2147483647, %v706
        %v715 = vand.u32 2147483647, %v707
        %v716 = vadd.f32 %v708, %v710
        %v717 = vadd.f32 %v716, %v712
        %v718 = vadd.f32 %v717, %v714
        %v719 = vrot.slane %v718, 4
        %v720 = vadd.f32 %v718, %v719
        %v721 = vrot.slane %v720, 2
        %v722 = vadd.f32 %v720, %v721
        %v723 = vrot.slane %v722, 1
        %v724 = vadd.f32 %v722, %v723
        %v725 = vadd.f32 %v709, %v711
        %v726 = vadd.f32 %v725, %v713
        %v727 = vadd.f32 %v726, %v715
        %v728 = vrot.slane %v727, 4
        %v729 = vadd.f32 %v727, %v728
        %v730 = vrot.slane %v729, 2
        %v731 = vadd.f32 %v729, %v730
        %v732 = vrot.slane %v731, 1
        %v733 = vadd.f32 %v731, %v732
        %v734 = vmin.f32 %v682, %v724
        %v735 = vmin.f32 %v683, %v733
        %v736 = vld [vmem:[%s390] sm:$0xff]
        %v737 = vld [vmem:[%s390 + $0x8] sm:$0xff]
        %v738 = vld [vmem:[%s390 + $0x10] sm:$0xff]
        %v739 = vld [vmem:[%s390 + $0x18] sm:$0xff]
        %v740 = vld [vmem:[%s390 + $0x20] sm:$0xff]
        %v741 = vld [vmem:[%s390 + $0x28] sm:$0xff]
        %v742 = vld [vmem:[%s390 + $0x30] sm:$0xff]
        %v743 = vld [vmem:[%s390 + $0x38] sm:$0xff]
        %v744 = vld [vmem:[%s408] sm:$0xff]
        %v745 = vld [vmem:[%s408 + $0x8] sm:$0xff]
        %v746 = vld [vmem:[%s408 + $0x10] sm:$0xff]
        %v747 = vld [vmem:[%s408 + $0x18] sm:$0xff]
        %v748 = vld [vmem:[%s408 + $0x20] sm:$0xff]
        %v749 = vld [vmem:[%s408 + $0x28] sm:$0xff]
        %v750 = vld [vmem:[%s408 + $0x30] sm:$0xff]
        %v751 = vld [vmem:[%s408 + $0x38] sm:$0xff]
        %v752 = vadd.f32 %v736, %v744
        %v753 = vadd.f32 %v737, %v745
        %v754 = vadd.f32 %v738, %v746
        %v755 = vadd.f32 %v739, %v747
        %v756 = vadd.f32 %v740, %v748
        %v757 = vadd.f32 %v741, %v749
        %v758 = vadd.f32 %v742, %v750
        %v759 = vadd.f32 %v743, %v751
        %v760 = vld [vmem:[%s399] sm:$0xff]
        %v761 = vld [vmem:[%s399 + $0x8] sm:$0xff]
        %v762 = vld [vmem:[%s399 + $0x10] sm:$0xff]
        %v763 = vld [vmem:[%s399 + $0x18] sm:$0xff]
        %v764 = vld [vmem:[%s399 + $0x20] sm:$0xff]
        %v765 = vld [vmem:[%s399 + $0x28] sm:$0xff]
        %v766 = vld [vmem:[%s399 + $0x30] sm:$0xff]
        %v767 = vld [vmem:[%s399 + $0x38] sm:$0xff]
        %v768 = vsub.f32 %v752, %v760
        %v769 = vsub.f32 %v753, %v761
        %v770 = vsub.f32 %v754, %v762
        %v771 = vsub.f32 %v755, %v763
        %v772 = vsub.f32 %v756, %v764
        %v773 = vsub.f32 %v757, %v765
        %v774 = vsub.f32 %v758, %v766
        %v775 = vsub.f32 %v759, %v767
        %v776 = vand.u32 2147483647, %v768
        %v777 = vand.u32 2147483647, %v769
        %v778 = vand.u32 2147483647, %v770
        %v779 = vand.u32 2147483647, %v771
        %v780 = vand.u32 2147483647, %v772
        %v781 = vand.u32 2147483647, %v773
        %v782 = vand.u32 2147483647, %v774
        %v783 = vand.u32 2147483647, %v775
        %v784 = vadd.f32 %v776, %v778
        %v785 = vadd.f32 %v784, %v780
        %v786 = vadd.f32 %v785, %v782
        %v787 = vrot.slane %v786, 4
        %v788 = vadd.f32 %v786, %v787
        %v789 = vrot.slane %v788, 2
        %v790 = vadd.f32 %v788, %v789
        %v791 = vrot.slane %v790, 1
        %v792 = vadd.f32 %v790, %v791
        %v793 = vadd.f32 %v777, %v779
        %v794 = vadd.f32 %v793, %v781
        %v795 = vadd.f32 %v794, %v783
        %v796 = vrot.slane %v795, 4
        %v797 = vadd.f32 %v795, %v796
        %v798 = vrot.slane %v797, 2
        %v799 = vadd.f32 %v797, %v798
        %v800 = vrot.slane %v799, 1
        %v801 = vadd.f32 %v799, %v800
        %v802 = vld [vmem:[%s435] sm:$0xff]
        %v803 = vld [vmem:[%s435 + $0x8] sm:$0xff]
        %v804 = vld [vmem:[%s435 + $0x10] sm:$0xff]
        %v805 = vld [vmem:[%s435 + $0x18] sm:$0xff]
        %v806 = vld [vmem:[%s435 + $0x20] sm:$0xff]
        %v807 = vld [vmem:[%s435 + $0x28] sm:$0xff]
        %v808 = vld [vmem:[%s435 + $0x30] sm:$0xff]
        %v809 = vld [vmem:[%s435 + $0x38] sm:$0xff]
        %v810 = vadd.f32 %v514, %v802
        %v811 = vadd.f32 %v515, %v803
        %v812 = vadd.f32 %v516, %v804
        %v813 = vadd.f32 %v517, %v805
        %v814 = vadd.f32 %v518, %v806
        %v815 = vadd.f32 %v519, %v807
        %v816 = vadd.f32 %v520, %v808
        %v817 = vadd.f32 %v521, %v809
        %v818 = vand.u32 2147483647, %v810
        %v819 = vand.u32 2147483647, %v811
        %v820 = vand.u32 2147483647, %v812
        %v821 = vand.u32 2147483647, %v813
        %v822 = vand.u32 2147483647, %v814
        %v823 = vand.u32 2147483647, %v815
        %v824 = vand.u32 2147483647, %v816
        %v825 = vand.u32 2147483647, %v817
        %v826 = vadd.f32 %v818, %v820
        %v827 = vadd.f32 %v826, %v822
        %v828 = vadd.f32 %v827, %v824
        %v829 = vrot.slane %v828, 4
        %v830 = vadd.f32 %v828, %v829
        %v831 = vrot.slane %v830, 2
        %v832 = vadd.f32 %v830, %v831
        %v833 = vrot.slane %v832, 1
        %v834 = vadd.f32 %v832, %v833
        %v835 = vadd.f32 %v819, %v821
        %v836 = vadd.f32 %v835, %v823
        %v837 = vadd.f32 %v836, %v825
        %v838 = vrot.slane %v837, 4
        %v839 = vadd.f32 %v837, %v838
        %v840 = vrot.slane %v839, 2
        %v841 = vadd.f32 %v839, %v840
        %v842 = vrot.slane %v841, 1
        %v843 = vadd.f32 %v841, %v842
        %v844 = vadd.f32 %v792, %v834
        %v845 = vadd.f32 %v801, %v843
        %v846 = vsub.f32 12.0, %v844
        %v847 = vsub.f32 12.0, %v845
        %v848 = vmul.f32 %v734, 0.5
        %v849 = vmul.f32 %v735, 0.5
        %v850 = vsub.f32 %v846, %v848
        %v851 = vsub.f32 %v847, %v849
        %v854 = vcombine.low %v850, %v851
        %v856 = vunpack.c.l.s4 1966171168
        %v857 = vunpack.c.0.s8 %v856
        %v858 = vlaneseq
        %v859 = vshrl.u32 %v858, 7
        %v860 = vsub.s32 %v857, %v859
        %v861 = vrot.slane %v854, %v860
        %v863 = vunpack.c.l.s4 1966171168
        %v864 = vunpack.c.0.s8 %v863
        %v865 = vlaneseq
        %v866 = vshrl.u32 %v865, 7
        %v867 = vsub.s32 %v864, %v866
        %v868 = vrot.slane %v861, %v867
        %v870 = vlaneseq
        %vm871 = vcmp.ge.s32.totalorder %v870, 0
        %vm872 = vcmp.lt.s32.totalorder %v870, 256
        %vm873 = vmand %vm871, %vm872
        %874 = vst.msk [vmem:[%s490] sm:$0x3] %vm873, %v868
        %s875 = sand.u32 %s218, 1
        %s876 = scalar_lea.sflag [#allocation4], %s875
        %s877 = sand.u32 %s218, 1
        %s878 = smul.addr %s877, 2
        %s879 = scalar_lea.vmem [#allocation13], %s878
        // Predicated region
        $region73: #{tpu_custom_call.1} parent=47 // pred_check
          %p880 = pneg %p228
        $region74: #{tpu_custom_call.1} parent=47 // pred_check_branch
          %882 = sbr.rel (%p880) target = $region76
        $region75: #{tpu_custom_call.1} parent=47 // pred_region
          %s883 = smul.u32 2, %s33
          %s885 = ssub.s32 32, 32
          %886 = vsyncadd %s876, %s885
          %s887 = smul.addr %s883, 16
          %s888 = scalar_lea.hbm %s7, %s887
          %s890 = sshll.u32 %s879, 4
          %s891 = int_to_ptr.vmem [resolvable:$true] %s890
          %893 = dma.vmem_to_hbm [thread:$0]  %s891, 32, %s888, %s876
        $region76: #{tpu_custom_call.1} parent=47 // pred_fallthru
          _
      $region48: #{tpu_custom_call.1} parent=5 // pred_fallthru
        _
      %p894 = scmp.le.s32.totalorder 2, %s28
      // Predicated region
      $region77: #{tpu_custom_call.1} parent=5 // pred_check
        %p895 = pneg %p894
      $region78: #{tpu_custom_call.1} parent=5 // pred_check_branch
        %897 = sbr.rel (%p895) target = $region80
      $region79: #{tpu_custom_call.1} parent=5 // pred_region
        %s898 = ssub.s32 %s28, 2
        // Predicated region
        $region81: #{tpu_custom_call.1} parent=79 // pred_check
          %p899 = pneg %p234
        $region82: #{tpu_custom_call.1} parent=79 // pred_check_branch
          %901 = sbr.rel (%p899) target = $region84
        $region83: #{tpu_custom_call.1} parent=79 // pred_region
          %s902 = sand.u32 %s219, 1
          %s903 = scalar_lea.sflag [#allocation4], %s902
          %s904 = sand.u32 %s219, 1
          %s905 = smul.addr %s904, 2
          %s906 = scalar_lea.vmem [#allocation13], %s905
          %907 = dma.done %s903, 32
        $region84: #{tpu_custom_call.1} parent=79 // pred_fallthru
          _
      $region80: #{tpu_custom_call.1} parent=5 // pred_fallthru
        _
    $region6: #{tpu_custom_call.1} parent=1 // loop_footer
      %s32 = sadd.s32 1, %s28
    $region7: #{tpu_custom_call.1} parent=1 // loop_footer_branch
      %27 = sbr.rel target = $region3
    $region8: #{tpu_custom_call.1} parent=1 // loop_exit
      _
    %908 = vsyncpa [#allocation3], 1
    %s909 = scalar_lea.sflag [#allocation3], 1
    %910 = vsyncpa %s909, 1
    %911 = vsyncpa [#allocation6], 1
    %s912 = scalar_lea.sflag [#allocation6], 1
    %913 = vsyncpa %s912, 1
    %914 = vsyncpa [#allocation9], 1
    %s915 = scalar_lea.sflag [#allocation9], 1
    %916 = vsyncpa %s915, 1
    %917 = vsyncpa [#allocation12], 1
    %s918 = scalar_lea.sflag [#allocation12], 1
    %919 = vsyncpa %s918, 1
    %920 = vsyncpa [#allocation4], 1
    %s921 = scalar_lea.sflag [#allocation4], 1
    %922 = vsyncpa %s921, 1

</llo_original>
